<compile_context>
chip_gen: v7x
topology: tpu7x:2x2x1
jax: 0.10.0
libtpu: 0.0.40
codegen_flags: <defaults>
</compile_context>

<pallas_src>
from functools import partial

import jax
import jax.numpy as jnp
from jax.experimental import pallas as pl
from jax.experimental.pallas import tpu as pltpu

_LANE = 128


def _round_up(x, m):
    return ((x + m - 1) // m) * m


def _pad2(a, rows, cols):
    return jnp.pad(a, ((0, rows - a.shape[0]), (0, cols - a.shape[1])))


def _device_budget():
    """(max_tile, vmem_limit_bytes) chosen per TPU generation by physical VMEM.

    v5e / v6e (128 MiB physical, 32 MiB scoped default): big tiles + ~100 MiB.
    v7x (64 MiB physical per TC): 512 tiles + 48 MiB so double-buffers and
    internal scratch keep headroom below the physical limit.
    """
    cap = 64 * 1024 * 1024
    try:
        cap = int(pltpu.get_tpu_info().vmem_capacity_bytes)
    except Exception:   # attribute / platform quirks -> conservative default
        pass
    if cap >= 96 * 1024 * 1024:
        return 1024, 100 * 1024 * 1024
    return 512, 48 * 1024 * 1024


def _const_spec(shape, index_map):
    """BlockSpec for grid-invariant operands: single-buffered to save VMEM."""
    try:
        return pl.BlockSpec(shape, index_map, pipeline_mode=pl.Buffered(1))
    except TypeError:   # older BlockSpec signature without pipeline_mode
        return pl.BlockSpec(shape, index_map)


def _fits_fused(n_p, f_in_p, f_out_p, vmem_limit):
    """Small-graph fast path: everything (with slack) in ~half the VMEM budget."""
    need = (n_p * n_p * 2              # A_norm bf16
            + n_p * f_in_p * 4         # H in (worst case f32)
            + f_in_p * f_out_p * 2     # W bf16
            + 3 * n_p * f_out_p * 4)   # XW + H f32 intermediates + output
    return 2 * need <= vmem_limit // 2


# ----------------------------------------------------------------------------- kernels
def _xw_kernel(x_ref, w_ref, scale_ref, shift_ref, o_ref, *, apply_norm_relu):
    """Row-tile feature transform; fuses the previous layer's BatchNorm affine
    (scale/shift from batch stats) + ReLU before the matmul."""
    x = x_ref[...].astype(jnp.float32)                 # bf16 H or f32 layer-1 X
    if apply_norm_relu:
        x = jnp.maximum(x * scale_ref[...] + shift_ref[...], 0.0)
    o_ref[...] = jnp.dot(x.astype(jnp.bfloat16), w_ref[...],
                         preferred_element_type=jnp.float32).astype(jnp.bfloat16)


def _agg_kernel(a_ref, xw_ref, b_ref, o_ref, sum_ref, sq_ref, acc_ref, *, add_bias):
    """H[i-tile] = sum_k A[i-tile,k-tile] @ XW[k-tile] (+bias at last k).
    At the last k step also emits per-row-tile BN partial sums / sum-of-squares
    (f32, computed before the bf16 downcast of H)."""
    k = pl.program_id(1)

    @pl.when(k == 0)
    def _():
        acc_ref[...] = jnp.zeros_like(acc_ref)

    acc_ref[...] += jnp.dot(a_ref[...], xw_ref[...],
                            preferred_element_type=jnp.float32)

    @pl.when(k == pl.num_programs(1) - 1)
    def _():
        h = acc_ref[...]
        if add_bias:
            h = h + b_ref[...]
        tm, f = h.shape
        hs = h.reshape(tm // 8, 8, f)          # cheap major-dim split; VPU adds
        sum_ref[...] = jnp.sum(hs, axis=0)     # (8, F) partial column sums
        sq_ref[...] = jnp.sum(hs * hs, axis=0)
        o_ref[...] = h.astype(o_ref.dtype)


def _fused_layer_kernel(a_ref, x_ref, w_ref, scale_ref, shift_ref, b_ref,
                        o_ref, sum_ref, sq_ref, *, apply_norm_relu, add_bias):
    """Whole layer in one kernel for graphs that fit VMEM."""
    x = x_ref[...].astype(jnp.float32)
    if apply_norm_relu:
        x = jnp.maximum(x * scale_ref[...] + shift_ref[...], 0.0)
    xw = jnp.dot(x.astype(jnp.bfloat16), w_ref[...],
                 preferred_element_type=jnp.float32)
    h = jnp.dot(a_ref[...], xw.astype(jnp.bfloat16),
                preferred_element_type=jnp.float32)
    if add_bias:
        h = h + b_ref[...]
    n, f = h.shape
    hs = h.reshape(n // 8, 8, f)
    sum_ref[...] = jnp.sum(hs, axis=0)
    sq_ref[...] = jnp.sum(hs * hs, axis=0)
    o_ref[...] = h.astype(o_ref.dtype)


# ----------------------------------------------------------------------------- pallas wrappers
def _xw(h_p, w_p, scale, shift, *, tile, vmem_limit, apply_norm_relu):
    n_p, f_in_p = h_p.shape
    f_out_p = w_p.shape[1]
    # TODO(synk): for very large hidden dims (f_in_p*f_out_p*2B >~ 16 MiB) add a
    # K grid axis ("arbitrary") so W is streamed in contraction tiles on v7x.
    return pl.pallas_call(
        partial(_xw_kernel, apply_norm_relu=apply_norm_relu),
        out_shape=jax.ShapeDtypeStruct((n_p, f_out_p), jnp.bfloat16),
        grid_spec=pltpu.PrefetchScalarGridSpec(
            num_scalar_prefetch=0, grid=(n_p // tile,),
            in_specs=[pl.BlockSpec((tile, f_in_p), lambda i: (i, 0)),
                      _const_spec((f_in_p, f_out_p), lambda i: (0, 0)),
                      _const_spec((1, f_in_p), lambda i: (0, 0)),
                      _const_spec((1, f_in_p), lambda i: (0, 0))],
            out_specs=pl.BlockSpec((tile, f_out_p), lambda i: (i, 0))),
        compiler_params=pltpu.CompilerParams(
            dimension_semantics=("parallel",),
            vmem_limit_bytes=vmem_limit),
    )(h_p, w_p, scale, shift)


def _aggregate(a_p, xw_p, b_p, *, tile, vmem_limit, add_bias, out_dtype):
    n_p = a_p.shape[0]
    f_out_p = xw_p.shape[1]
    nrt = n_p // tile
    return pl.pallas_call(
        partial(_agg_kernel, add_bias=add_bias),
        out_shape=(jax.ShapeDtypeStruct((n_p, f_out_p), out_dtype),
                   jax.ShapeDtypeStruct((nrt * 8, f_out_p), jnp.float32),
                   jax.ShapeDtypeStruct((nrt * 8, f_out_p), jnp.float32)),
        grid_spec=pltpu.PrefetchScalarGridSpec(
            num_scalar_prefetch=0, grid=(nrt, n_p // tile),
            in_specs=[pl.BlockSpec((tile, tile), lambda i, k: (i, k)),
                      pl.BlockSpec((tile, f_out_p), lambda i, k: (k, 0)),
                      _const_spec((1, f_out_p), lambda i, k: (0, 0))],
            out_specs=(pl.BlockSpec((tile, f_out_p), lambda i, k: (i, 0)),
                       pl.BlockSpec((8, f_out_p), lambda i, k: (i, 0)),
                       pl.BlockSpec((8, f_out_p), lambda i, k: (i, 0))),
            scratch_shapes=[pltpu.VMEM((tile, f_out_p), jnp.float32)]),
        compiler_params=pltpu.CompilerParams(
            dimension_semantics=("parallel", "arbitrary"),
            vmem_limit_bytes=vmem_limit),
    )(a_p, xw_p, b_p)


def _fused_layer(a_p, h_p, w_p, scale, shift, b_p, *, apply_norm_relu, add_bias,
                 out_dtype, vmem_limit):
    n_p = a_p.shape[0]
    f_out_p = w_p.shape[1]
    return pl.pallas_call(
        partial(_fused_layer_kernel, apply_norm_relu=apply_norm_relu,
                add_bias=add_bias),
        out_shape=(jax.ShapeDtypeStruct((n_p, f_out_p), out_dtype),
                   jax.ShapeDtypeStruct((8, f_out_p), jnp.float32),
                   jax.ShapeDtypeStruct((8, f_out_p), jnp.float32)),
        compiler_params=pltpu.CompilerParams(vmem_limit_bytes=vmem_limit),
    )(a_p, h_p, w_p, scale, shift, b_p)


# ----------------------------------------------------------------------------- layer glue
def _bn_affine(sums, sqs, gamma, beta, n_real, eps=1e-5):
    """Training-mode BatchNorm1d stats (over real node rows; padded rows are
    exactly zero) as a per-feature affine (scale, shift) to fuse into the next
    layer's XW pass.  Tiny per-feature math in plain JAX."""
    f_p = sums.shape[-1]
    s = jnp.sum(sums, axis=0, keepdims=True)
    q = jnp.sum(sqs, axis=0, keepdims=True)
    mean = s / n_real
    # TODO(synk): E[x^2]-E[x]^2 can cancel catastrophically for huge graphs;
    # switch to a two-pass mean-subtracted sum-of-squares if that regime matters.
    var = jnp.maximum(q / n_real - mean * mean, 0.0)       # biased var (BN train)
    g = jnp.pad(gamma.astype(jnp.float32), (0, f_p - gamma.shape[0])).reshape(1, -1)
    b = jnp.pad(beta.astype(jnp.float32), (0, f_p - beta.shape[0])).reshape(1, -1)
    scale = g * jax.lax.rsqrt(var + eps)                   # padded cols: gamma=0 -> 0
    shift = b - mean * scale
    return scale, shift


def _gcn_layer(a_p, h_p, w, b, *, tile, vmem_limit, scale, shift, add_bias,
               out_dtype, force_tiled=False):
    """One GCNConv: (fused prev-layer BN+ReLU) -> XW -> A@XW (+b) + BN partials."""
    n_p, f_in_p = h_p.shape
    f_out = w.shape[1]
    f_out_p = _round_up(f_out, _LANE)
    w_p = _pad2(w.astype(jnp.float32), f_in_p, f_out_p).astype(jnp.bfloat16)
    b_p = jnp.pad(b.astype(jnp.float32), (0, f_out_p - f_out)).reshape(1, -1)
    apply = scale is not None
    if not apply:
        scale = jnp.zeros((1, f_in_p), jnp.float32)
        shift = jnp.zeros((1, f_in_p), jnp.float32)

    if not force_tiled and _fits_fused(n_p, f_in_p, f_out_p, vmem_limit):
        return _fused_layer(a_p, h_p, w_p, scale, shift, b_p,
                            apply_norm_relu=apply, add_bias=add_bias,
                            out_dtype=out_dtype, vmem_limit=vmem_limit)

    xw = _xw(h_p, w_p, scale, shift, tile=tile, vmem_limit=vmem_limit,
             apply_norm_relu=apply)
    return _aggregate(a_p, xw, b_p, tile=tile, vmem_limit=vmem_limit,
                      add_bias=add_bias, out_dtype=out_dtype)


# ----------------------------------------------------------------------------- graph / params glue
def build_norm_adj(edge_index, num_nodes):
    """Dense D^-1/2 (A + I) D^-1/2 from edge_index [2, E] (GCNConv gcn_norm).
    Assumes edge_index has no pre-existing self-loops (matches the toy input)."""
    src, dst = edge_index[0], edge_index[1]
    a = jnp.zeros((num_nodes, num_nodes), jnp.float32)
    a = a.at[dst, src].add(1.0)                       # message flows src -> dst
    a = a + jnp.eye(num_nodes, dtype=jnp.float32)     # self-loops
    deg = jnp.sum(a, axis=1)
    dinv = jax.lax.rsqrt(jnp.maximum(deg, 1e-12))
    return a * dinv[:, None] * dinv[None, :]


def glorot(key, shape):
    limit = jnp.sqrt(6.0 / (shape[0] + shape[1]))
    return jax.random.uniform(key, shape, jnp.float32, -limit, limit)


def init_gcn_params(key, input_dim, hidden_dim, output_dim, num_hidden_layers=2):
    keys = jax.random.split(key, num_hidden_layers + 2)
    params = {}
    params["w1"] = glorot(keys[0], (input_dim, hidden_dim))
    params["b1"] = jnp.zeros((hidden_dim,), jnp.float32)
    params["g1"] = jnp.ones((hidden_dim,), jnp.float32)
    params["beta1"] = jnp.zeros((hidden_dim,), jnp.float32)
    params["hidden"] = []
    for i in range(num_hidden_layers - 1):
        params["hidden"].append(dict(
            w=glorot(keys[1 + i], (hidden_dim, hidden_dim)),
            b=jnp.zeros((hidden_dim,), jnp.float32),
            g=jnp.ones((hidden_dim,), jnp.float32),
            beta=jnp.zeros((hidden_dim,), jnp.float32),
        ))
    params["w_out"] = glorot(keys[-1], (hidden_dim, output_dim))
    params["b_out"] = jnp.zeros((output_dim,), jnp.float32)
    return params


def gcn_forward(params, x, edge_index, *, force_tiled=False):
    n, f_in = x.shape
    f_out_final = params["w_out"].shape[1]

    max_tile, vmem_limit = _device_budget()
    tile = min(max_tile, _round_up(max(n, 1), _LANE))
    n_p = _round_up(n, tile)
    f_in_p = _round_up(f_in, _LANE)

    a = build_norm_adj(edge_index, n)
    # TODO(synk): replace the dense O(N^2) adjacency with block-sparse tiles
    # gathered via scalar-prefetched tile indices for graphs beyond ~10^4 nodes.
    a_p = _pad2(a, n_p, n_p).astype(jnp.bfloat16)
    h = _pad2(x.astype(jnp.float32), n_p, f_in_p)     # layer-1 X kept in f32

    # GCNConv biases before a BatchNorm are exactly cancelled by the BN mean
    # subtraction, so add_bias=False there; this also keeps padded node rows of
    # H exactly zero, which the BN statistics (divide by real node count) rely
    # on.  Do NOT enable bias before a BN layer.
    h, sums, sqs = _gcn_layer(a_p, h, params["w1"], params["b1"], tile=tile,
                              vmem_limit=vmem_limit, scale=None, shift=None,
                              add_bias=False, out_dtype=jnp.bfloat16,
                              force_tiled=force_tiled)
    scale, shift = _bn_affine(sums, sqs, params["g1"], params["beta1"], n)

    for layer in params["hidden"]:
        h, sums, sqs = _gcn_layer(a_p, h, layer["w"], layer["b"], tile=tile,
                                  vmem_limit=vmem_limit, scale=scale, shift=shift,
                                  add_bias=False, out_dtype=jnp.bfloat16,
                                  force_tiled=force_tiled)
        scale, shift = _bn_affine(sums, sqs, layer["g"], layer["beta"], n)

    # conv_out: previous layer's BN+ReLU fused into this layer's XW; bias
    # applied (no BN follows); output kept f32 for the returned Q-values.
    h, _, _ = _gcn_layer(a_p, h, params["w_out"], params["b_out"], tile=tile,
                         vmem_limit=vmem_limit, scale=scale, shift=shift,
                         add_bias=True, out_dtype=jnp.float32,
                         force_tiled=force_tiled)
    return h[:n, :f_out_final]


# ----------------------------------------------------------------------------- main
if __name__ == "__main__":
    key = jax.random.PRNGKey(0)
    k_x, k_e, k_p = jax.random.split(key, 3)

    num_nodes = 16
    input_dim = 8
    hidden_dim = 32
    output_dim = 4
    num_hidden_layers = 2

    # node features [N, F_in]
    x = jax.random.normal(k_x, (num_nodes, input_dim), jnp.float32)

    # random undirected edge_index [2, E] (no self-loops; glue adds them)
    num_undirected = 20
    src = jax.random.randint(k_e, (num_undirected,), 0, num_nodes)
    dst = (src + 1 + jax.random.randint(jax.random.fold_in(k_e, 1),
                                        (num_undirected,), 0, num_nodes - 1)) % num_nodes
    edge_index = jnp.stack([jnp.concatenate([src, dst]),
                            jnp.concatenate([dst, src])], axis=0).astype(jnp.int32)

    params = init_gcn_params(k_p, input_dim, hidden_dim, output_dim, num_hidden_layers)

    # Default dispatch: small graph -> fused one-kernel-per-layer path.
    q_values = gcn_forward(params, x, edge_index)
    jax.block_until_ready(q_values)
    assert q_values.shape == (num_nodes, output_dim)
    assert bool(jnp.all(jnp.isfinite(q_values)))

    # Also exercise the tiled large-graph path and check it agrees.
    q_tiled = gcn_forward(params, x, edge_index, force_tiled=True)
    jax.block_until_ready(q_tiled)
    assert q_tiled.shape == (num_nodes, output_dim)
    assert bool(jnp.all(jnp.isfinite(q_tiled)))
    assert bool(jnp.allclose(q_values, q_tiled, rtol=2e-2, atol=2e-2))

    print("KERNEL_OK")
</pallas_src>

<mosaic_0001>
module attributes {stable_mosaic.version = 11 : i64} {
  func.func @_fused_layer_kernel(%arg0: memref<128x128xbf16, #tpu.memory_space<vmem>>, %arg1: memref<128x128xf32, #tpu.memory_space<vmem>>, %arg2: memref<128x128xbf16, #tpu.memory_space<vmem>>, %arg3: memref<1x128xf32, #tpu.memory_space<vmem>>, %arg4: memref<1x128xf32, #tpu.memory_space<vmem>>, %arg5: memref<1x128xf32, #tpu.memory_space<vmem>>, %arg6: memref<128x128xbf16, #tpu.memory_space<vmem>>, %arg7: memref<8x128xf32, #tpu.memory_space<vmem>>, %arg8: memref<8x128xf32, #tpu.memory_space<vmem>>) attributes {dimension_semantics = [], scalar_prefetch = 0 : i64, scratch_operands = 0 : i64, tpu.core_type = #tpu.core_type<tc>} {
    %c0 = arith.constant 0 : index
    %c0_0 = arith.constant 0 : index
    %0 = vector.load %arg1[%c0, %c0_0] : memref<128x128xf32, #tpu.memory_space<vmem>>, vector<128x128xf32>
    %1 = arith.truncf %0 : vector<128x128xf32> to vector<128x128xbf16>
    %c0_1 = arith.constant 0 : index
    %c0_2 = arith.constant 0 : index
    %2 = vector.load %arg2[%c0_1, %c0_2] : memref<128x128xbf16, #tpu.memory_space<vmem>>, vector<128x128xbf16>
    %cst = arith.constant dense<0.000000e+00> : vector<128x128xf32>
    %3 = tpu.matmul %1, %2, %cst {dimension_numbers = #tpu.dot_dimension_numbers<[1], [0], [0], [1], [0, 0, 1, 1], [], []>} : vector<128x128xbf16>, vector<128x128xbf16>, vector<128x128xf32> -> vector<128x128xf32>
    %c0_3 = arith.constant 0 : index
    %c0_4 = arith.constant 0 : index
    %4 = vector.load %arg0[%c0_3, %c0_4] : memref<128x128xbf16, #tpu.memory_space<vmem>>, vector<128x128xbf16>
    %5 = arith.truncf %3 : vector<128x128xf32> to vector<128x128xbf16>
    %cst_5 = arith.constant dense<0.000000e+00> : vector<128x128xf32>
    %6 = tpu.matmul %4, %5, %cst_5 {dimension_numbers = #tpu.dot_dimension_numbers<[1], [0], [0], [1], [0, 0, 1, 1], [], []>} : vector<128x128xbf16>, vector<128x128xbf16>, vector<128x128xf32> -> vector<128x128xf32>
    %7 = vector.shape_cast %6 : vector<128x128xf32> to vector<16x8x128xf32>
    %cst_6 = arith.constant dense<0.000000e+00> : vector<8x128xf32>
    %8 = vector.multi_reduction <add>, %7, %cst_6 [0] : vector<16x8x128xf32> to vector<8x128xf32>
    %c0_7 = arith.constant 0 : index
    %c0_8 = arith.constant 0 : index
    %9 = vector.load %arg7[%c0_7, %c0_8] : memref<8x128xf32, #tpu.memory_space<vmem>>, vector<8x128xf32>
    tpu.vector_store %arg7[%c0_7, %c0_8], %8 {strides = array<i32>} : memref<8x128xf32, #tpu.memory_space<vmem>>, vector<8x128xf32>,
    %10 = arith.mulf %7, %7 : vector<16x8x128xf32>
    %cst_9 = arith.constant dense<0.000000e+00> : vector<8x128xf32>
    %11 = vector.multi_reduction <add>, %10, %cst_9 [0] : vector<16x8x128xf32> to vector<8x128xf32>
    %c0_10 = arith.constant 0 : index
    %c0_11 = arith.constant 0 : index
    %12 = vector.load %arg8[%c0_10, %c0_11] : memref<8x128xf32, #tpu.memory_space<vmem>>, vector<8x128xf32>
    tpu.vector_store %arg8[%c0_10, %c0_11], %11 {strides = array<i32>} : memref<8x128xf32, #tpu.memory_space<vmem>>, vector<8x128xf32>,
    %13 = arith.truncf %6 : vector<128x128xf32> to vector<128x128xbf16>
    %c0_12 = arith.constant 0 : index
    %c0_13 = arith.constant 0 : index
    %14 = vector.load %arg6[%c0_12, %c0_13] : memref<128x128xbf16, #tpu.memory_space<vmem>>, vector<128x128xbf16>
    tpu.vector_store %arg6[%c0_12, %c0_13], %13 {strides = array<i32>} : memref<128x128xbf16, #tpu.memory_space<vmem>>, vector<128x128xbf16>,
    return
  }
}

</mosaic_0001>

<llo_original>
// kernel: tpu_custom_call.1
$region0: #{tpu_custom_call.1}
  #allocation0 [shape = 'u32[]', space=smem, size = 0x4, offset = 0x4, fixed_abs, tag = 'smem constant byte address 0x4 - core index']
  #allocation1 [shape = 'u32[144,128]{1,0:T(1,128)}', space=vmem, size = 0x12000, scoped, tag = 'internal scratch']
  %s0 = inlined_call_operand.hbm [shape: bf16[128,128], index: 0, kind: input, shape index: {}]
  %s1 = inlined_call_operand.hbm [shape: f32[128,128], index: 1, kind: input, shape index: {}]
  %s2 = inlined_call_operand.hbm [shape: bf16[128,128], index: 2, kind: input, shape index: {}]
  %s3 = inlined_call_operand.vmem [shape: f32[1,128], index: 3, kind: input, shape index: {}]
  %s4 = inlined_call_operand.vmem [shape: f32[1,128], index: 4, kind: input, shape index: {}]
  %s5 = inlined_call_operand.vmem [shape: f32[1,128], index: 5, kind: input, shape index: {}]
  %s6 = inlined_call_operand.hbm [shape: bf16[128,128], index: 6, kind: output, shape index: {0}]
  %s7 = inlined_call_operand.hbm [shape: f32[8,128], index: 7, kind: output, shape index: {1}]
  %s8 = inlined_call_operand.hbm [shape: f32[8,128], index: 8, kind: output, shape index: {2}]
  %9 = xla_tuple %s6, %s7, %s8
  %s10 = sld [smem:[#allocation0]]
  $region62: #{tpu_custom_call.1} parent=0
    _
  %s12 = ssub.s32 1, %s10
  %s13 = scalar_select 0, %s12, %s10
  $region1: #{tpu_custom_call.1} parent=0
    #allocation2 [shape = 'u8[32768]{0}', space=vmem, size = 0x8000, scoped, tag = 'input window, operand 0, single buffered']
    #allocation3 [shape = 's32[1]{0}', space=sflag, size = 0x4, scoped, tag = 'scoped memory for tpu_custom_call.1']
    #allocation4 [shape = 's32[1]{0}', space=sflag, size = 0x4, scoped, tag = 'scoped memory for tpu_custom_call.1']
    #allocation5 [shape = 'u8[65536]{0}', space=vmem, size = 0x10000, scoped, tag = 'input window, operand 1, single buffered']
    #allocation6 [shape = 's32[1]{0}', space=sflag, size = 0x4, scoped, tag = 'scoped memory for tpu_custom_call.1']
    #allocation7 [shape = 'u8[32768]{0}', space=vmem, size = 0x8000, scoped, tag = 'input window, operand 2, single buffered']
    #allocation8 [shape = 'u8[32768]{0}', space=vmem, size = 0x8000, scoped, tag = 'output window, operand 0, single buffered']
    #allocation9 [shape = 'u8[4096]{0}', space=vmem, size = 0x1000, scoped, tag = 'output window, operand 1, single buffered']
    #allocation10 [shape = 's32[1]{0}', space=sflag, size = 0x4, scoped, tag = 'scoped memory for tpu_custom_call.1']
    #allocation11 [shape = 'u8[4096]{0}', space=vmem, size = 0x1000, scoped, tag = 'output window, operand 2, single buffered']
    %14 = vsyncpa [#allocation3], 0
    %15 = vsyncpa [#allocation6], 0
    %16 = vsyncpa [#allocation4], 0
    %17 = vsyncpa [#allocation10], 0
    // Predicated region
    $region2: #{tpu_custom_call.1} parent=1 // pred_check
      _
    $region3: #{tpu_custom_call.1} parent=1 // pred_check_branch
      %19 = sbr.rel (0) target = $region5
    $region4: #{tpu_custom_call.1} parent=1 // pred_region
      %s21 = ssub.s32 1024, 1024
      %22 = vsyncadd [#allocation3], %s21
      %s23 = sshll.u32 [#allocation2], 4
      %s24 = int_to_ptr.vmem [resolvable:$true] %s23
      %29 = dma.hbm_to_vmem [thread:$0]  %s0, 1024, %s24, [#allocation3], 64, 64, 4
    $region5: #{tpu_custom_call.1} parent=1 // pred_fallthru
      _
    // Predicated region
    $region6: #{tpu_custom_call.1} parent=1 // pred_check
      _
    $region7: #{tpu_custom_call.1} parent=1 // pred_check_branch
      %31 = sbr.rel (0) target = $region9
    $region8: #{tpu_custom_call.1} parent=1 // pred_region
      %s33 = ssub.s32 2048, 2048
      %34 = vsyncadd [#allocation6], %s33
      %s35 = sshll.u32 [#allocation5], 4
      %s36 = int_to_ptr.vmem [resolvable:$true] %s35
      %41 = dma.hbm_to_vmem [thread:$0]  %s1, 2048, %s36, [#allocation6], 128, 128, 8
    $region9: #{tpu_custom_call.1} parent=1 // pred_fallthru
      _
    // Predicated region
    $region10: #{tpu_custom_call.1} parent=1 // pred_check
      _
    $region11: #{tpu_custom_call.1} parent=1 // pred_check_branch
      %43 = sbr.rel (0) target = $region13
    $region12: #{tpu_custom_call.1} parent=1 // pred_region
      %s45 = ssub.s32 1024, 1024
      %46 = vsyncadd [#allocation6], %s45
      %s47 = sshll.u32 [#allocation7], 4
      %s48 = int_to_ptr.vmem [resolvable:$true] %s47
      %53 = dma.hbm_to_vmem [thread:$0]  %s2, 1024, %s48, [#allocation6], 64, 64, 4
    $region13: #{tpu_custom_call.1} parent=1 // pred_fallthru
      _
    // Predicated region
    $region14: #{tpu_custom_call.1} parent=1 // pred_check
      _
    $region15: #{tpu_custom_call.1} parent=1 // pred_check_branch
      %55 = sbr.rel (0) target = $region17
    $region16: #{tpu_custom_call.1} parent=1 // pred_region
      _
    $region17: #{tpu_custom_call.1} parent=1 // pred_fallthru
      _
    // Predicated region
    $region18: #{tpu_custom_call.1} parent=1 // pred_check
      _
    $region19: #{tpu_custom_call.1} parent=1 // pred_check_branch
      %57 = sbr.rel (0) target = $region21
    $region20: #{tpu_custom_call.1} parent=1 // pred_region
      _
    $region21: #{tpu_custom_call.1} parent=1 // pred_fallthru
      _
    // Predicated region
    $region22: #{tpu_custom_call.1} parent=1 // pred_check
      _
    $region23: #{tpu_custom_call.1} parent=1 // pred_check_branch
      %59 = sbr.rel (0) target = $region25
    $region24: #{tpu_custom_call.1} parent=1 // pred_region
      _
    $region25: #{tpu_custom_call.1} parent=1 // pred_fallthru
      _
    // Predicated region
    $region26: #{tpu_custom_call.1} parent=1 // pred_check
      _
    $region27: #{tpu_custom_call.1} parent=1 // pred_check_branch
      %61 = sbr.rel (0) target = $region29
    $region28: #{tpu_custom_call.1} parent=1 // pred_region
      %62 = dma.done [#allocation3], 1024
    $region29: #{tpu_custom_call.1} parent=1 // pred_fallthru
      _
    // Predicated region
    $region30: #{tpu_custom_call.1} parent=1 // pred_check
      _
    $region31: #{tpu_custom_call.1} parent=1 // pred_check_branch
      %64 = sbr.rel (0) target = $region33
    $region32: #{tpu_custom_call.1} parent=1 // pred_region
      %65 = dma.done [#allocation6], 2048
    $region33: #{tpu_custom_call.1} parent=1 // pred_fallthru
      _
    // Predicated region
    $region34: #{tpu_custom_call.1} parent=1 // pred_check
      _
    $region35: #{tpu_custom_call.1} parent=1 // pred_check_branch
      %67 = sbr.rel (0) target = $region37
    $region36: #{tpu_custom_call.1} parent=1 // pred_region
      %68 = dma.done [#allocation6], 1024
    $region37: #{tpu_custom_call.1} parent=1 // pred_fallthru
      _
    %v70 = vld [vmem:[#allocation5] sm:$0xff]
    %v71 = vld [vmem:[#allocation5 + $0x8] sm:$0xff]
    %v72 = vld [vmem:[#allocation5 + $0x10] sm:$0xff]
    %v73 = vld [vmem:[#allocation5 + $0x18] sm:$0xff]
    %v74 = vld [vmem:[#allocation5 + $0x20] sm:$0xff]
    %v75 = vld [vmem:[#allocation5 + $0x28] sm:$0xff]
    %v76 = vld [vmem:[#allocation5 + $0x30] sm:$0xff]
    %v77 = vld [vmem:[#allocation5 + $0x38] sm:$0xff]
    %v78 = vld [vmem:[#allocation5 + $0x40] sm:$0xff]
    %v79 = vld [vmem:[#allocation5 + $0x48] sm:$0xff]
    %v80 = vld [vmem:[#allocation5 + $0x50] sm:$0xff]
    %v81 = vld [vmem:[#allocation5 + $0x58] sm:$0xff]
    %v82 = vld [vmem:[#allocation5 + $0x60] sm:$0xff]
    %v83 = vld [vmem:[#allocation5 + $0x68] sm:$0xff]
    %v84 = vld [vmem:[#allocation5 + $0x70] sm:$0xff]
    %v85 = vld [vmem:[#allocation5 + $0x78] sm:$0xff]
    %v86 = vpack.c.bf16 %v71, %v70
    %v87 = vpack.c.bf16 %v73, %v72
    %v88 = vpack.c.bf16 %v75, %v74
    %v89 = vpack.c.bf16 %v77, %v76
    %v90 = vpack.c.bf16 %v79, %v78
    %v91 = vpack.c.bf16 %v81, %v80
    %v92 = vpack.c.bf16 %v83, %v82
    %v93 = vpack.c.bf16 %v85, %v84
    %v94 = vld [vmem:[#allocation7] sm:$0xf]
    %v95 = vld [vmem:[#allocation7 + $0x4] sm:$0xf]
    %v96 = vld [vmem:[#allocation7 + $0x8] sm:$0xf]
    %v97 = vld [vmem:[#allocation7 + $0xc] sm:$0xf]
    %v98 = vld [vmem:[#allocation7 + $0x10] sm:$0xf]
    %v99 = vld [vmem:[#allocation7 + $0x14] sm:$0xf]
    %v100 = vld [vmem:[#allocation7 + $0x18] sm:$0xf]
    %v101 = vld [vmem:[#allocation7 + $0x1c] sm:$0xf]
    %v102 = vld [vmem:[#allocation7 + $0x20] sm:$0xf]
    %v103 = vld [vmem:[#allocation7 + $0x24] sm:$0xf]
    %v104 = vld [vmem:[#allocation7 + $0x28] sm:$0xf]
    %v105 = vld [vmem:[#allocation7 + $0x2c] sm:$0xf]
    %v106 = vld [vmem:[#allocation7 + $0x30] sm:$0xf]
    %v107 = vld [vmem:[#allocation7 + $0x34] sm:$0xf]
    %v108 = vld [vmem:[#allocation7 + $0x38] sm:$0xf]
    %v109 = vld [vmem:[#allocation7 + $0x3c] sm:$0xf]
    %v126 = vunpack.c.l.b16 %v94
    %v127 = vunpack.c.l.b16 %v95
    %v128 = vunpack.c.l.b16 %v96
    %v129 = vunpack.c.l.b16 %v97
    %v130 = vunpack.c.l.b16 %v98
    %v131 = vunpack.c.l.b16 %v99
    %v132 = vunpack.c.l.b16 %v100
    %v133 = vunpack.c.l.b16 %v101
    %v134 = vunpack.c.l.b16 %v102
    %v135 = vunpack.c.l.b16 %v103
    %v136 = vunpack.c.l.b16 %v104
    %v137 = vunpack.c.l.b16 %v105
    %v138 = vunpack.c.l.b16 %v106
    %v139 = vunpack.c.l.b16 %v107
    %v140 = vunpack.c.l.b16 %v108
    %v141 = vunpack.c.l.b16 %v109
    %v142 = vpack.c.b16 %v127, %v126
    %v143 = vpack.c.b16 %v129, %v128
    %v144 = vpack.c.b16 %v131, %v130
    %v145 = vpack.c.b16 %v133, %v132
    %v146 = vpack.c.b16 %v135, %v134
    %v147 = vpack.c.b16 %v137, %v136
    %v148 = vpack.c.b16 %v139, %v138
    %v149 = vpack.c.b16 %v141, %v140
    %158 = vmatprep.subr.bf16.mxu0 0
    %159 = vmatpush1.bf16.msra.mxu0 %v142
    %160 = vmatprep.subr.bf16.mxu0 0
    %161 = vmatpush1.bf16.msra.mxu0 %v143
    %162 = vmatprep.subr.bf16.mxu0 0
    %163 = vmatpush1.bf16.msra.mxu0 %v144
    %164 = vmatprep.subr.bf16.mxu0 0
    %165 = vmatpush1.bf16.msra.mxu0 %v145
    %166 = vmatprep.subr.bf16.mxu0 0
    %167 = vmatpush1.bf16.msra.mxu0 %v146
    %168 = vmatprep.subr.bf16.mxu0 0
    %169 = vmatpush1.bf16.msra.mxu0 %v147
    %170 = vmatprep.subr.bf16.mxu0 0
    %171 = vmatpush1.bf16.msra.mxu0 %v148
    %172 = vmatprep.subr.bf16.mxu0 0
    %173 = vmatpush1.bf16.msra.mxu0 %v149
    %174 = vmatprep.subr.bf16.mxu0 0
    %175 = vmatpush1.bf16.msra.mxu0 0
    %176 = vmatprep.subr.bf16.mxu0 0
    %177 = vmatpush1.bf16.msra.mxu0 0
    %178 = vmatprep.subr.bf16.mxu0 0
    %179 = vmatpush1.bf16.msra.mxu0 0
    %180 = vmatprep.subr.bf16.mxu0 0
    %181 = vmatpush1.bf16.msra.mxu0 0
    %182 = vmatprep.subr.bf16.mxu0 0
    %183 = vmatpush1.bf16.msra.mxu0 0
    %184 = vmatprep.subr.bf16.mxu0 0
    %185 = vmatpush1.bf16.msra.mxu0 0
    %186 = vmatprep.subr.bf16.mxu0 0
    %187 = vmatpush1.bf16.msra.mxu0 0
    %188 = vmatprep.subr.bf16.mxu0 0
    %189 = vmatpush1.bf16.msra.mxu0 0
    %190 = vmatprep.mubr.bf16.mxu0 0
    %191 = vmatmul.mubr.bf16.gmra.mrb[0].mxu0 %v86
    %v192 = vpop.f32.mrb[0].mxu0
    %v193 = vadd.f32 0.0, %v192
    %v194 = vpop.f32.mrb[0].mxu0
    %v195 = vpop.f32.mrb[0].mxu0
    %v196 = vadd.f32 0.0, %v195
    %v197 = vpop.f32.mrb[0].mxu0
    %198 = vmatprep.mubr.bf16.mxu0 0
    %199 = vmatmul.mubr.bf16.gmra.mrb[0].mxu0 %v87
    %v200 = vpop.f32.mrb[0].mxu0
    %v201 = vadd.f32 0.0, %v200
    %v202 = vpop.f32.mrb[0].mxu0
    %v203 = vpop.f32.mrb[0].mxu0
    %v204 = vadd.f32 0.0, %v203
    %v205 = vpop.f32.mrb[0].mxu0
    %206 = vmatprep.mubr.bf16.mxu0 0
    %207 = vmatmul.mubr.bf16.gmra.mrb[0].mxu0 %v88
    %v208 = vpop.f32.mrb[0].mxu0
    %v209 = vadd.f32 0.0, %v208
    %v210 = vpop.f32.mrb[0].mxu0
    %v211 = vpop.f32.mrb[0].mxu0
    %v212 = vadd.f32 0.0, %v211
    %v213 = vpop.f32.mrb[0].mxu0
    %214 = vmatprep.mubr.bf16.mxu0 0
    %215 = vmatmul.mubr.bf16.gmra.mrb[0].mxu0 %v89
    %v216 = vpop.f32.mrb[0].mxu0
    %v217 = vadd.f32 0.0, %v216
    %v218 = vpop.f32.mrb[0].mxu0
    %v219 = vpop.f32.mrb[0].mxu0
    %v220 = vadd.f32 0.0, %v219
    %v221 = vpop.f32.mrb[0].mxu0
    %222 = vmatprep.mubr.bf16.mxu0 0
    %223 = vmatmul.mubr.bf16.gmra.mrb[0].mxu0 %v90
    %v224 = vpop.f32.mrb[0].mxu0
    %v225 = vadd.f32 0.0, %v224
    %v226 = vpop.f32.mrb[0].mxu0
    %v227 = vpop.f32.mrb[0].mxu0
    %v228 = vadd.f32 0.0, %v227
    %v229 = vpop.f32.mrb[0].mxu0
    %230 = vmatprep.mubr.bf16.mxu0 0
    %231 = vmatmul.mubr.bf16.gmra.mrb[0].mxu0 %v91
    %v232 = vpop.f32.mrb[0].mxu0
    %v233 = vadd.f32 0.0, %v232
    %v234 = vpop.f32.mrb[0].mxu0
    %v235 = vpop.f32.mrb[0].mxu0
    %v236 = vadd.f32 0.0, %v235
    %v237 = vpop.f32.mrb[0].mxu0
    %238 = vmatprep.mubr.bf16.mxu0 0
    %239 = vmatmul.mubr.bf16.gmra.mrb[0].mxu0 %v92
    %v240 = vpop.f32.mrb[0].mxu0
    %v241 = vadd.f32 0.0, %v240
    %v242 = vpop.f32.mrb[0].mxu0
    %v243 = vpop.f32.mrb[0].mxu0
    %v244 = vadd.f32 0.0, %v243
    %v245 = vpop.f32.mrb[0].mxu0
    %246 = vmatprep.mubr.bf16.mxu0 0
    %247 = vmatmul.mubr.bf16.gmra.mrb[0].mxu0 %v93
    %v248 = vpop.f32.mrb[0].mxu0
    %v249 = vadd.f32 0.0, %v248
    %v250 = vpop.f32.mrb[0].mxu0
    %v251 = vpop.f32.mrb[0].mxu0
    %v252 = vadd.f32 0.0, %v251
    %v253 = vpop.f32.mrb[0].mxu0
    %254 = vdwg.mxu0
    %v255 = vld [vmem:[#allocation2] sm:$0xf]
    %v256 = vld [vmem:[#allocation2 + $0x4] sm:$0xf]
    %v257 = vld [vmem:[#allocation2 + $0x8] sm:$0xf]
    %v258 = vld [vmem:[#allocation2 + $0xc] sm:$0xf]
    %v259 = vld [vmem:[#allocation2 + $0x10] sm:$0xf]
    %v260 = vld [vmem:[#allocation2 + $0x14] sm:$0xf]
    %v261 = vld [vmem:[#allocation2 + $0x18] sm:$0xf]
    %v262 = vld [vmem:[#allocation2 + $0x1c] sm:$0xf]
    %v263 = vld [vmem:[#allocation2 + $0x20] sm:$0xf]
    %v264 = vld [vmem:[#allocation2 + $0x24] sm:$0xf]
    %v265 = vld [vmem:[#allocation2 + $0x28] sm:$0xf]
    %v266 = vld [vmem:[#allocation2 + $0x2c] sm:$0xf]
    %v267 = vld [vmem:[#allocation2 + $0x30] sm:$0xf]
    %v268 = vld [vmem:[#allocation2 + $0x34] sm:$0xf]
    %v269 = vld [vmem:[#allocation2 + $0x38] sm:$0xf]
    %v270 = vld [vmem:[#allocation2 + $0x3c] sm:$0xf]
    %v271 = vpack.c.bf16 %v196, %v193
    %v272 = vpack.c.bf16 %v204, %v201
    %v273 = vpack.c.bf16 %v212, %v209
    %v274 = vpack.c.bf16 %v220, %v217
    %v275 = vpack.c.bf16 %v228, %v225
    %v276 = vpack.c.bf16 %v236, %v233
    %v277 = vpack.c.bf16 %v244, %v241
    %v278 = vpack.c.bf16 %v252, %v249
    %v295 = vunpack.c.l.b16 %v255
    %v296 = vunpack.c.l.b16 %v256
    %v297 = vunpack.c.l.b16 %v257
    %v298 = vunpack.c.l.b16 %v258
    %v299 = vunpack.c.l.b16 %v259
    %v300 = vunpack.c.l.b16 %v260
    %v301 = vunpack.c.l.b16 %v261
    %v302 = vunpack.c.l.b16 %v262
    %v303 = vunpack.c.l.b16 %v263
    %v304 = vunpack.c.l.b16 %v264
    %v305 = vunpack.c.l.b16 %v265
    %v306 = vunpack.c.l.b16 %v266
    %v307 = vunpack.c.l.b16 %v267
    %v308 = vunpack.c.l.b16 %v268
    %v309 = vunpack.c.l.b16 %v269
    %v310 = vunpack.c.l.b16 %v270
    %v311 = vpack.c.b16 %v296, %v295
    %v312 = vpack.c.b16 %v298, %v297
    %v313 = vpack.c.b16 %v300, %v299
    %v314 = vpack.c.b16 %v302, %v301
    %v315 = vpack.c.b16 %v304, %v303
    %v316 = vpack.c.b16 %v306, %v305
    %v317 = vpack.c.b16 %v308, %v307
    %v318 = vpack.c.b16 %v310, %v309
    %327 = vmatprep.subr.bf16.mxu0 0
    %328 = vmatpush1.bf16.msra.mxu0 %v271
    %329 = vmatprep.subr.bf16.mxu0 0
    %330 = vmatpush1.bf16.msra.mxu0 %v272
    %331 = vmatprep.subr.bf16.mxu0 0
    %332 = vmatpush1.bf16.msra.mxu0 %v273
    %333 = vmatprep.subr.bf16.mxu0 0
    %334 = vmatpush1.bf16.msra.mxu0 %v274
    %335 = vmatprep.subr.bf16.mxu0 0
    %336 = vmatpush1.bf16.msra.mxu0 %v275
    %337 = vmatprep.subr.bf16.mxu0 0
    %338 = vmatpush1.bf16.msra.mxu0 %v276
    %339 = vmatprep.subr.bf16.mxu0 0
    %340 = vmatpush1.bf16.msra.mxu0 %v277
    %341 = vmatprep.subr.bf16.mxu0 0
    %342 = vmatpush1.bf16.msra.mxu0 %v278
    %343 = vmatprep.subr.bf16.mxu0 0
    %344 = vmatpush1.bf16.msra.mxu0 0
    %345 = vmatprep.subr.bf16.mxu0 0
    %346 = vmatpush1.bf16.msra.mxu0 0
    %347 = vmatprep.subr.bf16.mxu0 0
    %348 = vmatpush1.bf16.msra.mxu0 0
    %349 = vmatprep.subr.bf16.mxu0 0
    %350 = vmatpush1.bf16.msra.mxu0 0
    %351 = vmatprep.subr.bf16.mxu0 0
    %352 = vmatpush1.bf16.msra.mxu0 0
    %353 = vmatprep.subr.bf16.mxu0 0
    %354 = vmatpush1.bf16.msra.mxu0 0
    %355 = vmatprep.subr.bf16.mxu0 0
    %356 = vmatpush1.bf16.msra.mxu0 0
    %357 = vmatprep.subr.bf16.mxu0 0
    %358 = vmatpush1.bf16.msra.mxu0 0
    %359 = vmatprep.mubr.bf16.mxu0 0
    %360 = vmatmul.mubr.bf16.gmra.mrb[0].mxu0 %v311
    %v361 = vpop.f32.mrb[0].mxu0
    %v362 = vadd.f32 0.0, %v361
    %v363 = vpop.f32.mrb[0].mxu0
    %v364 = vpop.f32.mrb[0].mxu0
    %v365 = vadd.f32 0.0, %v364
    %v366 = vpop.f32.mrb[0].mxu0
    %367 = vmatprep.mubr.bf16.mxu0 0
    %368 = vmatmul.mubr.bf16.gmra.mrb[0].mxu0 %v312
    %v369 = vpop.f32.mrb[0].mxu0
    %v370 = vadd.f32 0.0, %v369
    %v371 = vpop.f32.mrb[0].mxu0
    %v372 = vpop.f32.mrb[0].mxu0
    %v373 = vadd.f32 0.0, %v372
    %v374 = vpop.f32.mrb[0].mxu0
    %375 = vmatprep.mubr.bf16.mxu0 0
    %376 = vmatmul.mubr.bf16.gmra.mrb[0].mxu0 %v313
    %v377 = vpop.f32.mrb[0].mxu0
    %v378 = vadd.f32 0.0, %v377
    %v379 = vpop.f32.mrb[0].mxu0
    %v380 = vpop.f32.mrb[0].mxu0
    %v381 = vadd.f32 0.0, %v380
    %v382 = vpop.f32.mrb[0].mxu0
    %383 = vmatprep.mubr.bf16.mxu0 0
    %384 = vmatmul.mubr.bf16.gmra.mrb[0].mxu0 %v314
    %v385 = vpop.f32.mrb[0].mxu0
    %v386 = vadd.f32 0.0, %v385
    %v387 = vpop.f32.mrb[0].mxu0
    %v388 = vpop.f32.mrb[0].mxu0
    %v389 = vadd.f32 0.0, %v388
    %v390 = vpop.f32.mrb[0].mxu0
    %391 = vmatprep.mubr.bf16.mxu0 0
    %392 = vmatmul.mubr.bf16.gmra.mrb[0].mxu0 %v315
    %v393 = vpop.f32.mrb[0].mxu0
    %v394 = vadd.f32 0.0, %v393
    %v395 = vpop.f32.mrb[0].mxu0
    %v396 = vpop.f32.mrb[0].mxu0
    %v397 = vadd.f32 0.0, %v396
    %v398 = vpop.f32.mrb[0].mxu0
    %399 = vmatprep.mubr.bf16.mxu0 0
    %400 = vmatmul.mubr.bf16.gmra.mrb[0].mxu0 %v316
    %v401 = vpop.f32.mrb[0].mxu0
    %v402 = vadd.f32 0.0, %v401
    %v403 = vpop.f32.mrb[0].mxu0
    %v404 = vpop.f32.mrb[0].mxu0
    %v405 = vadd.f32 0.0, %v404
    %v406 = vpop.f32.mrb[0].mxu0
    %407 = vmatprep.mubr.bf16.mxu0 0
    %408 = vmatmul.mubr.bf16.gmra.mrb[0].mxu0 %v317
    %v409 = vpop.f32.mrb[0].mxu0
    %v410 = vadd.f32 0.0, %v409
    %v411 = vpop.f32.mrb[0].mxu0
    %v412 = vpop.f32.mrb[0].mxu0
    %v413 = vadd.f32 0.0, %v412
    %v414 = vpop.f32.mrb[0].mxu0
    %415 = vmatprep.mubr.bf16.mxu0 0
    %416 = vmatmul.mubr.bf16.gmra.mrb[0].mxu0 %v318
    %v417 = vpop.f32.mrb[0].mxu0
    %v418 = vadd.f32 0.0, %v417
    %v419 = vpop.f32.mrb[0].mxu0
    %v420 = vpop.f32.mrb[0].mxu0
    %v421 = vadd.f32 0.0, %v420
    %v422 = vpop.f32.mrb[0].mxu0
    %423 = vdwg.mxu0
    %v424 = vadd.f32 %v362, %v365
    %v425 = vadd.f32 %v424, %v370
    %v426 = vadd.f32 %v425, %v373
    %v427 = vadd.f32 %v426, %v378
    %v428 = vadd.f32 %v427, %v381
    %v429 = vadd.f32 %v428, %v386
    %v430 = vadd.f32 %v429, %v389
    %v431 = vadd.f32 %v430, %v394
    %v432 = vadd.f32 %v431, %v397
    %v433 = vadd.f32 %v432, %v402
    %v434 = vadd.f32 %v433, %v405
    %v435 = vadd.f32 %v434, %v410
    %v436 = vadd.f32 %v435, %v413
    %v437 = vadd.f32 %v436, %v418
    %v438 = vadd.f32 %v437, %v421
    %439 = vst [vmem:[#allocation9] sm:$0xff] %v438
    %v440 = vmul.f32 %v362, %v362
    %v441 = vmul.f32 %v365, %v365
    %v442 = vmul.f32 %v370, %v370
    %v443 = vmul.f32 %v373, %v373
    %v444 = vmul.f32 %v378, %v378
    %v445 = vmul.f32 %v381, %v381
    %v446 = vmul.f32 %v386, %v386
    %v447 = vmul.f32 %v389, %v389
    %v448 = vmul.f32 %v394, %v394
    %v449 = vmul.f32 %v397, %v397
    %v450 = vmul.f32 %v402, %v402
    %v451 = vmul.f32 %v405, %v405
    %v452 = vmul.f32 %v410, %v410
    %v453 = vmul.f32 %v413, %v413
    %v454 = vmul.f32 %v418, %v418
    %v455 = vmul.f32 %v421, %v421
    %v456 = vadd.f32 %v440, %v441
    %v457 = vadd.f32 %v456, %v442
    %v458 = vadd.f32 %v457, %v443
    %v459 = vadd.f32 %v458, %v444
    %v460 = vadd.f32 %v459, %v445
    %v461 = vadd.f32 %v460, %v446
    %v462 = vadd.f32 %v461, %v447
    %v463 = vadd.f32 %v462, %v448
    %v464 = vadd.f32 %v463, %v449
    %v465 = vadd.f32 %v464, %v450
    %v466 = vadd.f32 %v465, %v451
    %v467 = vadd.f32 %v466, %v452
    %v468 = vadd.f32 %v467, %v453
    %v469 = vadd.f32 %v468, %v454
    %v470 = vadd.f32 %v469, %v455
    %471 = vst [vmem:[#allocation11] sm:$0xff] %v470
    %v472 = vpack.c.bf16 %v365, %v362
    %v473 = vpack.c.bf16 %v373, %v370
    %v474 = vpack.c.bf16 %v381, %v378
    %v475 = vpack.c.bf16 %v389, %v386
    %v476 = vpack.c.bf16 %v397, %v394
    %v477 = vpack.c.bf16 %v405, %v402
    %v478 = vpack.c.bf16 %v413, %v410
    %v479 = vpack.c.bf16 %v421, %v418
    %v488 = vunpack.c.l.b16 %v472
    %v489 = vunpack.c.h.b16 %v472
    %v490 = vunpack.c.l.b16 %v473
    %v491 = vunpack.c.h.b16 %v473
    %v492 = vunpack.c.l.b16 %v474
    %v493 = vunpack.c.h.b16 %v474
    %v494 = vunpack.c.l.b16 %v475
    %v495 = vunpack.c.h.b16 %v475
    %v496 = vunpack.c.l.b16 %v476
    %v497 = vunpack.c.h.b16 %v476
    %v498 = vunpack.c.l.b16 %v477
    %v499 = vunpack.c.h.b16 %v477
    %v500 = vunpack.c.l.b16 %v478
    %v501 = vunpack.c.h.b16 %v478
    %v502 = vunpack.c.l.b16 %v479
    %v503 = vunpack.c.h.b16 %v479
    %v504 = vpack.c.b16 %v488, %v488
    %v505 = vpack.c.b16 %v489, %v489
    %v506 = vpack.c.b16 %v490, %v490
    %v507 = vpack.c.b16 %v491, %v491
    %v508 = vpack.c.b16 %v492, %v492
    %v509 = vpack.c.b16 %v493, %v493
    %v510 = vpack.c.b16 %v494, %v494
    %v511 = vpack.c.b16 %v495, %v495
    %v512 = vpack.c.b16 %v496, %v496
    %v513 = vpack.c.b16 %v497, %v497
    %v514 = vpack.c.b16 %v498, %v498
    %v515 = vpack.c.b16 %v499, %v499
    %v516 = vpack.c.b16 %v500, %v500
    %v517 = vpack.c.b16 %v501, %v501
    %v518 = vpack.c.b16 %v502, %v502
    %v519 = vpack.c.b16 %v503, %v503
    %536 = vst [vmem:[#allocation8] sm:$0xf] %v504
    %537 = vst [vmem:[#allocation8 + $0x4] sm:$0xf] %v505
    %538 = vst [vmem:[#allocation8 + $0x8] sm:$0xf] %v506
    %539 = vst [vmem:[#allocation8 + $0xc] sm:$0xf] %v507
    %540 = vst [vmem:[#allocation8 + $0x10] sm:$0xf] %v508
    %541 = vst [vmem:[#allocation8 + $0x14] sm:$0xf] %v509
    %542 = vst [vmem:[#allocation8 + $0x18] sm:$0xf] %v510
    %543 = vst [vmem:[#allocation8 + $0x1c] sm:$0xf] %v511
    %544 = vst [vmem:[#allocation8 + $0x20] sm:$0xf] %v512
    %545 = vst [vmem:[#allocation8 + $0x24] sm:$0xf] %v513
    %546 = vst [vmem:[#allocation8 + $0x28] sm:$0xf] %v514
    %547 = vst [vmem:[#allocation8 + $0x2c] sm:$0xf] %v515
    %548 = vst [vmem:[#allocation8 + $0x30] sm:$0xf] %v516
    %549 = vst [vmem:[#allocation8 + $0x34] sm:$0xf] %v517
    %550 = vst [vmem:[#allocation8 + $0x38] sm:$0xf] %v518
    %551 = vst [vmem:[#allocation8 + $0x3c] sm:$0xf] %v519
    // Predicated region
    $region38: #{tpu_custom_call.1} parent=1 // pred_check
      _
    $region39: #{tpu_custom_call.1} parent=1 // pred_check_branch
      %553 = sbr.rel (0) target = $region41
    $region40: #{tpu_custom_call.1} parent=1 // pred_region
      %s555 = ssub.s32 1024, 1024
      %556 = vsyncadd [#allocation4], %s555
      %s557 = sshll.u32 [#allocation8], 4
      %s558 = int_to_ptr.vmem [resolvable:$true] %s557
      %563 = dma.vmem_to_hbm [thread:$0]  %s558, 1024, %s6, [#allocation4], 64, 64, 4
    $region41: #{tpu_custom_call.1} parent=1 // pred_fallthru
      _
    // Predicated region
    $region42: #{tpu_custom_call.1} parent=1 // pred_check
      _
    $region43: #{tpu_custom_call.1} parent=1 // pred_check_branch
      %565 = sbr.rel (0) target = $region45
    $region44: #{tpu_custom_call.1} parent=1 // pred_region
      %s567 = ssub.s32 128, 128
      %568 = vsyncadd [#allocation10], %s567
      %s570 = sshll.u32 [#allocation9], 4
      %s571 = int_to_ptr.vmem [resolvable:$true] %s570
      %573 = dma.vmem_to_hbm [thread:$0]  %s571, 128, %s7, [#allocation10]
    $region45: #{tpu_custom_call.1} parent=1 // pred_fallthru
      _
    // Predicated region
    $region46: #{tpu_custom_call.1} parent=1 // pred_check
      _
    $region47: #{tpu_custom_call.1} parent=1 // pred_check_branch
      %575 = sbr.rel (0) target = $region49
    $region48: #{tpu_custom_call.1} parent=1 // pred_region
      %s577 = ssub.s32 128, 128
      %578 = vsyncadd [#allocation10], %s577
      %s580 = sshll.u32 [#allocation11], 4
      %s581 = int_to_ptr.vmem [resolvable:$true] %s580
      %583 = dma.vmem_to_hbm [thread:$0]  %s581, 128, %s8, [#allocation10]
    $region49: #{tpu_custom_call.1} parent=1 // pred_fallthru
      _
    // Predicated region
    $region50: #{tpu_custom_call.1} parent=1 // pred_check
      _
    $region51: #{tpu_custom_call.1} parent=1 // pred_check_branch
      %585 = sbr.rel (0) target = $region53
    $region52: #{tpu_custom_call.1} parent=1 // pred_region
      %586 = dma.done [#allocation4], 1024
    $region53: #{tpu_custom_call.1} parent=1 // pred_fallthru
      _
    // Predicated region
    $region54: #{tpu_custom_call.1} parent=1 // pred_check
      _
    $region55: #{tpu_custom_call.1} parent=1 // pred_check_branch
      %588 = sbr.rel (0) target = $region57
    $region56: #{tpu_custom_call.1} parent=1 // pred_region
      %589 = dma.done [#allocation10], 128
    $region57: #{tpu_custom_call.1} parent=1 // pred_fallthru
      _
    // Predicated region
    $region58: #{tpu_custom_call.1} parent=1 // pred_check
      _
    $region59: #{tpu_custom_call.1} parent=1 // pred_check_branch
      %591 = sbr.rel (0) target = $region61
    $region60: #{tpu_custom_call.1} parent=1 // pred_region
      %592 = dma.done [#allocation10], 128
    $region61: #{tpu_custom_call.1} parent=1 // pred_fallthru
      _
    %593 = vsyncpa [#allocation3], 1
    %594 = vsyncpa [#allocation6], 1
    %595 = vsyncpa [#allocation4], 1
    %596 = vsyncpa [#allocation10], 1

</llo_original>
